<compile_context>
chip_gen: v7x
topology: tpu7x:2x2x1
jax: 0.10.0
libtpu: 0.0.40
codegen_flags: <defaults>
</compile_context>

<pallas_src>
import jax
import jax.numpy as jnp
from jax.experimental import pallas as pl
from jax.experimental.pallas import tpu as pltpu

LANE = 128


def _round_up(n, m):
    return ((n + m - 1) // m) * m


# ---------------------------------------------------------------------------
# Kernel
# ---------------------------------------------------------------------------
def _policy_kernel(scale_ref,          # SMEM (1,1) f32
                   x_ref, a_ref,       # (TB, obs_dim), (TB, act_dim)
                   w1o_ref, w1a_ref, b1_ref,
                   w2_ref, b2_ref,
                   wfc_ref, bfc_ref,
                   out_ref):           # (TB, act_dim)
    scale = scale_ref[0, 0]
    cdt = w1o_ref.dtype  # compute dtype for MXU operands (bf16 by default)

    a_f32 = a_ref[...].astype(jnp.float32)

    # Encoder layer 1: split-W1 matmul replaces concat([x, a]) @ W1.
    h = (jnp.dot(x_ref[...].astype(cdt), w1o_ref[...],
                 preferred_element_type=jnp.float32)
         + jnp.dot(a_f32.astype(cdt), w1a_ref[...],
                   preferred_element_type=jnp.float32)
         + b1_ref[...])
    h = jnp.maximum(h, 0.0)

    # Encoder layer 2.
    h = jnp.dot(h.astype(cdt), w2_ref[...],
                preferred_element_type=jnp.float32) + b2_ref[...]
    h = jnp.maximum(h, 0.0)

    # Policy head: fc -> tanh (EUP) -> scale -> residual add -> clamp.
    fc = jnp.dot(h.astype(cdt), wfc_ref[...],
                 preferred_element_type=jnp.float32) + bfc_ref[...]
    residual = scale * jnp.tanh(fc)
    out = jnp.clip(a_f32 + residual, -1.0, 1.0)
    out_ref[...] = out.astype(out_ref.dtype)


# ---------------------------------------------------------------------------
# Parameter setup (one-time): split W1, pad hidden dim to 128-lane multiple,
# cast weights to bf16. Action dims stay unpadded (streams stay narrow).
# Invariant: padded hidden rows/cols are zero-filled (keeps padded lanes inert).
# ---------------------------------------------------------------------------
def prepare_params(raw_params, obs_dim, action_dim, hidden_size,
                   *, weight_dtype=jnp.bfloat16, lane_multiple=LANE):
    w1, b1, w2, b2, wfc, bfc = raw_params  # weights laid out as (in, out)
    hp = _round_up(hidden_size, lane_multiple)

    def pad2(w, rows, cols):
        return jnp.pad(w, ((0, rows - w.shape[0]), (0, cols - w.shape[1])))

    w1o = pad2(w1[:obs_dim], obs_dim, hp).astype(weight_dtype)
    w1a = pad2(w1[obs_dim:], action_dim, hp).astype(weight_dtype)
    b1p = pad2(b1, 1, hp).astype(jnp.float32)
    w2p = pad2(w2, hp, hp).astype(weight_dtype)
    b2p = pad2(b2, 1, hp).astype(jnp.float32)
    wfcp = pad2(wfc, hp, action_dim).astype(weight_dtype)
    bfcp = bfc.astype(jnp.float32)
    return (w1o, w1a, b1p, w2p, b2p, wfcp, bfcp)


def _vmem_estimate(tb, obs_dim, act_dim, hidden_pad, weights):
    f32 = 4
    # Resident weight/bias blocks are double-buffered by default -> count x2.
    weight_bytes = 2 * sum(int(w.size) * w.dtype.itemsize for w in weights)
    # Double-buffered x / action / out tiles.
    act_stream = 2 * tb * (obs_dim + 2 * act_dim) * f32
    # f32 intermediates over the (padded) hidden dimension.
    intermediates = 3 * tb * hidden_pad * f32
    return weight_bytes + act_stream + intermediates + (2 << 20)


def _choose_batch_tile(batch, block_batch):
    """Pick a batch tile: big tiles to amortize the ~0.35us/step overhead, but
    keep >= 2 grid steps when there is enough work so the 'parallel' batch axis
    can shard across v7x's two TensorCores."""
    assert block_batch % 8 == 0
    if batch <= block_batch:
        if batch >= 256:
            half = _round_up((batch + 1) // 2, 8)
            return min(half, batch)
        return batch  # single full-dim block (always a legal block shape)
    return block_batch


# ---------------------------------------------------------------------------
# Wrapper
# ---------------------------------------------------------------------------
def deterministic_residual_policy(x, action, prepared, scale, *, block_batch=2048):
    """Returns (mu, squashed_mu, logstd=None) matching the PyTorch module."""
    w1o, w1a, b1, w2, b2, wfc, bfc = prepared
    batch, act_dim = action.shape
    obs_dim = x.shape[-1]
    hidden_pad = w2.shape[0]

    tb = _choose_batch_tile(batch, block_batch)
    grid = (pl.cdiv(batch, tb),)

    est = _vmem_estimate(tb, obs_dim, act_dim, hidden_pad, prepared)
    # Only raise the scoped VMEM limit when needed; cap well below v7x's 64 MiB.
    vmem_limit = None if est <= (16 << 20) else min(est, 48 << 20)

    scale_arr = jnp.full((1, 1), scale, jnp.float32)

    def row_spec(cols):
        return pl.BlockSpec((tb, cols), lambda i: (i, 0))

    def resident_spec(arr):
        return pl.BlockSpec(arr.shape, lambda i, _nd=arr.ndim: (0,) * _nd)

    out = pl.pallas_call(
        _policy_kernel,
        out_shape=jax.ShapeDtypeStruct((batch, act_dim), action.dtype),
        grid=grid,
        in_specs=[
            pl.BlockSpec(memory_space=pltpu.MemorySpace.SMEM),  # scale scalar
            row_spec(obs_dim),                                  # x        (raw)
            row_spec(act_dim),                                  # action   (raw, unpadded)
            resident_spec(w1o), resident_spec(w1a), resident_spec(b1),
            resident_spec(w2), resident_spec(b2),
            resident_spec(wfc), resident_spec(bfc),
        ],
        out_specs=row_spec(act_dim),                            # unpadded output
        compiler_params=pltpu.CompilerParams(
            dimension_semantics=("parallel",),
            vmem_limit_bytes=vmem_limit,
        ),
    )(scale_arr, x, action, w1o, w1a, b1, w2, b2, wfc, bfc)

    # ActionOutput(mu=action, squashed_mu=action, logstd=None)
    return out, out, None


# ---------------------------------------------------------------------------
# Init + reference
# ---------------------------------------------------------------------------
def init_params(key, obs_dim, action_dim, hidden_size):
    """PyTorch-Linear-style init: U(-1/sqrt(fan_in), 1/sqrt(fan_in)); W as (in, out)."""
    in_dim = obs_dim + action_dim
    keys = jax.random.split(key, 6)

    def lin(kw, kb, fan_in, fan_out):
        bound = 1.0 / jnp.sqrt(fan_in)
        w = jax.random.uniform(kw, (fan_in, fan_out), jnp.float32, -bound, bound)
        b = jax.random.uniform(kb, (1, fan_out), jnp.float32, -bound, bound)
        return w, b

    w1, b1 = lin(keys[0], keys[1], in_dim, hidden_size)
    w2, b2 = lin(keys[2], keys[3], hidden_size, hidden_size)
    wfc, bfc = lin(keys[4], keys[5], hidden_size, action_dim)
    return (w1, b1, w2, b2, wfc, bfc)


def _reference(x, action, raw_params, scale, weight_dtype=jnp.bfloat16):
    """Pure-JAX reference with the same bf16-operand / f32-accumulate math."""
    w1, b1, w2, b2, wfc, bfc = raw_params
    dt = weight_dtype
    xa = jnp.concatenate([x, action], axis=-1)
    h = jnp.dot(xa.astype(dt), w1.astype(dt),
                preferred_element_type=jnp.float32) + b1
    h = jax.nn.relu(h)
    h = jnp.dot(h.astype(dt), w2.astype(dt),
                preferred_element_type=jnp.float32) + b2
    h = jax.nn.relu(h)
    fc = jnp.dot(h.astype(dt), wfc.astype(dt),
                 preferred_element_type=jnp.float32) + bfc
    res = scale * jnp.tanh(fc)
    return jnp.clip(action + res, -1.0, 1.0)


def _run_case(batch, obs_dim, action_dim, hidden_size, scale, seed):
    key = jax.random.PRNGKey(seed)
    k_x, k_a, k_p = jax.random.split(key, 3)
    x = jax.random.normal(k_x, (batch, obs_dim), jnp.float32)
    action = jnp.clip(jax.random.normal(k_a, (batch, action_dim), jnp.float32),
                      -1.0, 1.0)

    raw_params = init_params(k_p, obs_dim, action_dim, hidden_size)
    prepared = prepare_params(raw_params, obs_dim, action_dim, hidden_size)

    mu, squashed_mu, logstd = deterministic_residual_policy(x, action, prepared, scale)
    jax.block_until_ready(mu)

    ref = _reference(x, action, raw_params, scale)
    assert logstd is None
    assert mu.shape == (batch, action_dim)
    assert jnp.allclose(mu, ref, atol=1e-4, rtol=1e-4), "mismatch vs pure-JAX reference"
    assert jnp.allclose(squashed_mu, mu)


if __name__ == "__main__":
    # Small primary case (matches the module's expected small shapes).
    _run_case(batch=2, obs_dim=16, action_dim=4, hidden_size=32, scale=0.05, seed=0)
    # Multi-step grid case (exercises batch tiling / 2-step parallel grid path).
    _run_case(batch=512, obs_dim=16, action_dim=4, hidden_size=32, scale=0.05, seed=0)
    print("KERNEL_OK")
</pallas_src>

<mosaic_0001>
module attributes {stable_mosaic.version = 11 : i64} {
  func.func @_policy_kernel(%arg0: i32, %arg1: memref<1x1xf32, #tpu.memory_space<smem>>, %arg2: memref<2x16xf32, #tpu.memory_space<vmem>>, %arg3: memref<2x4xf32, #tpu.memory_space<vmem>>, %arg4: memref<16x128xbf16, #tpu.memory_space<vmem>>, %arg5: memref<4x128xbf16, #tpu.memory_space<vmem>>, %arg6: memref<1x128xf32, #tpu.memory_space<vmem>>, %arg7: memref<128x128xbf16, #tpu.memory_space<vmem>>, %arg8: memref<1x128xf32, #tpu.memory_space<vmem>>, %arg9: memref<128x4xbf16, #tpu.memory_space<vmem>>, %arg10: memref<1x4xf32, #tpu.memory_space<vmem>>, %arg11: memref<2x4xf32, #tpu.memory_space<vmem>>) attributes {dimension_semantics = [#tpu.dimension_semantics<parallel>], iteration_bounds = array<i64: 1>, scalar_prefetch = 0 : i64, scratch_operands = 0 : i64, tpu.core_type = #tpu.core_type<tc>, window_params = [{transform_indices = @transform_0, window_bounds = array<i64: 1, 1>}, {transform_indices = @transform_1, window_bounds = array<i64: 2, 16>}, {transform_indices = @transform_2, window_bounds = array<i64: 2, 4>}, {pipeline_mode = #tpu.pipeline_mode<synchronous>, transform_indices = @transform_3, window_bounds = array<i64: 16, 128>}, {pipeline_mode = #tpu.pipeline_mode<synchronous>, transform_indices = @transform_4, window_bounds = array<i64: 4, 128>}, {pipeline_mode = #tpu.pipeline_mode<synchronous>, transform_indices = @transform_5, window_bounds = array<i64: 1, 128>}, {pipeline_mode = #tpu.pipeline_mode<synchronous>, transform_indices = @transform_6, window_bounds = array<i64: 128, 128>}, {pipeline_mode = #tpu.pipeline_mode<synchronous>, transform_indices = @transform_7, window_bounds = array<i64: 1, 128>}, {pipeline_mode = #tpu.pipeline_mode<synchronous>, transform_indices = @transform_8, window_bounds = array<i64: 128, 4>}, {pipeline_mode = #tpu.pipeline_mode<synchronous>, transform_indices = @transform_9, window_bounds = array<i64: 1, 4>}, {transform_indices = @transform_10, window_bounds = array<i64: 2, 4>}]} {
    %c0 = arith.constant 0 : index
    %c0_0 = arith.constant 0 : index
    %0 = memref.load %arg1[%c0, %c0_0] : memref<1x1xf32, #tpu.memory_space<smem>>
    %c0_1 = arith.constant 0 : index
    %c0_2 = arith.constant 0 : index
    %1 = vector.load %arg3[%c0_1, %c0_2] : memref<2x4xf32, #tpu.memory_space<vmem>>, vector<2x4xf32>
    %c0_3 = arith.constant 0 : index
    %c0_4 = arith.constant 0 : index
    %2 = vector.load %arg2[%c0_3, %c0_4] : memref<2x16xf32, #tpu.memory_space<vmem>>, vector<2x16xf32>
    %3 = arith.truncf %2 : vector<2x16xf32> to vector<2x16xbf16>
    %c0_5 = arith.constant 0 : index
    %c0_6 = arith.constant 0 : index
    %4 = vector.load %arg4[%c0_5, %c0_6] : memref<16x128xbf16, #tpu.memory_space<vmem>>, vector<16x128xbf16>
    %cst = arith.constant dense<0.000000e+00> : vector<2x128xf32>
    %5 = tpu.matmul %3, %4, %cst {dimension_numbers = #tpu.dot_dimension_numbers<[1], [0], [0], [1], [0, 0, 1, 1], [], []>} : vector<2x16xbf16>, vector<16x128xbf16>, vector<2x128xf32> -> vector<2x128xf32>
    %6 = arith.truncf %1 : vector<2x4xf32> to vector<2x4xbf16>
    %c0_7 = arith.constant 0 : index
    %c0_8 = arith.constant 0 : index
    %7 = vector.load %arg5[%c0_7, %c0_8] : memref<4x128xbf16, #tpu.memory_space<vmem>>, vector<4x128xbf16>
    %cst_9 = arith.constant dense<0.000000e+00> : vector<2x128xf32>
    %8 = tpu.matmul %6, %7, %cst_9 {dimension_numbers = #tpu.dot_dimension_numbers<[1], [0], [0], [1], [0, 0, 1, 1], [], []>} : vector<2x4xbf16>, vector<4x128xbf16>, vector<2x128xf32> -> vector<2x128xf32>
    %9 = arith.addf %5, %8 : vector<2x128xf32>
    %c0_10 = arith.constant 0 : index
    %c0_11 = arith.constant 0 : index
    %10 = vector.load %arg6[%c0_10, %c0_11] : memref<1x128xf32, #tpu.memory_space<vmem>>, vector<1x128xf32>
    %11 = vector.broadcast %10 : vector<1x128xf32> to vector<2x128xf32>
    %12 = arith.addf %9, %11 : vector<2x128xf32>
    %cst_12 = arith.constant 0.000000e+00 : f32
    %13 = vector.broadcast %cst_12 : f32 to vector<2x128xf32>
    %14 = arith.maximumf %12, %13 : vector<2x128xf32>
    %15 = arith.truncf %14 : vector<2x128xf32> to vector<2x128xbf16>
    %c0_13 = arith.constant 0 : index
    %c0_14 = arith.constant 0 : index
    %16 = vector.load %arg7[%c0_13, %c0_14] : memref<128x128xbf16, #tpu.memory_space<vmem>>, vector<128x128xbf16>
    %cst_15 = arith.constant dense<0.000000e+00> : vector<2x128xf32>
    %17 = tpu.matmul %15, %16, %cst_15 {dimension_numbers = #tpu.dot_dimension_numbers<[1], [0], [0], [1], [0, 0, 1, 1], [], []>} : vector<2x128xbf16>, vector<128x128xbf16>, vector<2x128xf32> -> vector<2x128xf32>
    %c0_16 = arith.constant 0 : index
    %c0_17 = arith.constant 0 : index
    %18 = vector.load %arg8[%c0_16, %c0_17] : memref<1x128xf32, #tpu.memory_space<vmem>>, vector<1x128xf32>
    %19 = vector.broadcast %18 : vector<1x128xf32> to vector<2x128xf32>
    %20 = arith.addf %17, %19 : vector<2x128xf32>
    %cst_18 = arith.constant 0.000000e+00 : f32
    %21 = vector.broadcast %cst_18 : f32 to vector<2x128xf32>
    %22 = arith.maximumf %20, %21 : vector<2x128xf32>
    %23 = arith.truncf %22 : vector<2x128xf32> to vector<2x128xbf16>
    %c0_19 = arith.constant 0 : index
    %c0_20 = arith.constant 0 : index
    %24 = vector.load %arg9[%c0_19, %c0_20] : memref<128x4xbf16, #tpu.memory_space<vmem>>, vector<128x4xbf16>
    %cst_21 = arith.constant dense<0.000000e+00> : vector<2x4xf32>
    %25 = tpu.matmul %23, %24, %cst_21 {dimension_numbers = #tpu.dot_dimension_numbers<[1], [0], [0], [1], [0, 0, 1, 1], [], []>} : vector<2x128xbf16>, vector<128x4xbf16>, vector<2x4xf32> -> vector<2x4xf32>
    %c0_22 = arith.constant 0 : index
    %c0_23 = arith.constant 0 : index
    %26 = vector.load %arg10[%c0_22, %c0_23] : memref<1x4xf32, #tpu.memory_space<vmem>>, vector<1x4xf32>
    %27 = vector.broadcast %26 : vector<1x4xf32> to vector<2x4xf32>
    %28 = arith.addf %25, %27 : vector<2x4xf32>
    %29 = math.tanh %28 : vector<2x4xf32>
    %30 = vector.broadcast %0 : f32 to vector<2x4xf32>
    %31 = arith.mulf %30, %29 : vector<2x4xf32>
    %32 = arith.addf %1, %31 : vector<2x4xf32>
    %cst_24 = arith.constant -1.000000e+00 : f32
    %cst_25 = arith.constant 1.000000e+00 : f32
    %33 = vector.broadcast %cst_24 : f32 to vector<2x4xf32>
    %34 = arith.maximumf %33, %32 : vector<2x4xf32>
    %35 = vector.broadcast %cst_25 : f32 to vector<2x4xf32>
    %36 = arith.minimumf %35, %34 : vector<2x4xf32>
    %c0_26 = arith.constant 0 : index
    %c0_27 = arith.constant 0 : index
    %37 = vector.load %arg11[%c0_26, %c0_27] : memref<2x4xf32, #tpu.memory_space<vmem>>, vector<2x4xf32>
    tpu.vector_store %arg11[%c0_26, %c0_27], %36 {strides = array<i32>} : memref<2x4xf32, #tpu.memory_space<vmem>>, vector<2x4xf32>,
    return
  }
  func.func @transform_0(%arg0: i32) -> (i32, i32) {
    %c0_i32 = arith.constant 0 : i32
    %c0_i32_0 = arith.constant 0 : i32
    %c0_i32_1 = arith.constant 0 : i32
    return %c0_i32, %c0_i32_0 : i32, i32
  }
  func.func @transform_1(%arg0: i32) -> (i32, i32) {
    %c0_i32 = arith.constant 0 : i32
    %c0_i32_0 = arith.constant 0 : i32
    return %arg0, %c0_i32 : i32, i32
  }
  func.func @transform_2(%arg0: i32) -> (i32, i32) {
    %c0_i32 = arith.constant 0 : i32
    %c0_i32_0 = arith.constant 0 : i32
    return %arg0, %c0_i32 : i32, i32
  }
  func.func @transform_3(%arg0: i32) -> (i32, i32) {
    %c0_i32 = arith.constant 0 : i32
    %c0_i32_0 = arith.constant 0 : i32
    %c0_i32_1 = arith.constant 0 : i32
    return %c0_i32, %c0_i32_0 : i32, i32
  }
  func.func @transform_4(%arg0: i32) -> (i32, i32) {
    %c0_i32 = arith.constant 0 : i32
    %c0_i32_0 = arith.constant 0 : i32
    %c0_i32_1 = arith.constant 0 : i32
    return %c0_i32, %c0_i32_0 : i32, i32
  }
  func.func @transform_5(%arg0: i32) -> (i32, i32) {
    %c0_i32 = arith.constant 0 : i32
    %c0_i32_0 = arith.constant 0 : i32
    %c0_i32_1 = arith.constant 0 : i32
    return %c0_i32, %c0_i32_0 : i32, i32
  }
  func.func @transform_6(%arg0: i32) -> (i32, i32) {
    %c0_i32 = arith.constant 0 : i32
    %c0_i32_0 = arith.constant 0 : i32
    %c0_i32_1 = arith.constant 0 : i32
    return %c0_i32, %c0_i32_0 : i32, i32
  }
  func.func @transform_7(%arg0: i32) -> (i32, i32) {
    %c0_i32 = arith.constant 0 : i32
    %c0_i32_0 = arith.constant 0 : i32
    %c0_i32_1 = arith.constant 0 : i32
    return %c0_i32, %c0_i32_0 : i32, i32
  }
  func.func @transform_8(%arg0: i32) -> (i32, i32) {
    %c0_i32 = arith.constant 0 : i32
    %c0_i32_0 = arith.constant 0 : i32
    %c0_i32_1 = arith.constant 0 : i32
    return %c0_i32, %c0_i32_0 : i32, i32
  }
  func.func @transform_9(%arg0: i32) -> (i32, i32) {
    %c0_i32 = arith.constant 0 : i32
    %c0_i32_0 = arith.constant 0 : i32
    %c0_i32_1 = arith.constant 0 : i32
    return %c0_i32, %c0_i32_0 : i32, i32
  }
  func.func @transform_10(%arg0: i32) -> (i32, i32) {
    %c0_i32 = arith.constant 0 : i32
    %c0_i32_0 = arith.constant 0 : i32
    return %arg0, %c0_i32 : i32, i32
  }
}

</mosaic_0001>

<llo_original>
// kernel: tpu_custom_call.1
$region0: #{tpu_custom_call.1}
  #allocation0 [shape = 'u32[]', space=smem, size = 0x4, offset = 0x4, fixed_abs, tag = 'smem constant byte address 0x4 - core index']
  #allocation1 [shape = 'u32[144,128]{1,0:T(1,128)}', space=vmem, size = 0x12000, scoped, tag = 'internal scratch']
  #allocation2 [shape = 'f32[1,1]{1,0:T(1,128)S(6)}', space=smem, size = 0x200, scoped, tag = 'scoped memory for tpu_custom_call.1']
  %s0 = inlined_call_operand.<no memory space> [shape: f32[1,1], index: 0, kind: input, shape index: {}]
  %s1 = inlined_call_operand.vmem [shape: f32[2,16], index: 1, kind: input, shape index: {}]
  %s2 = inlined_call_operand.vmem [shape: f32[2,4], index: 2, kind: input, shape index: {}]
  %s3 = inlined_call_operand.vmem [shape: bf16[16,128], index: 3, kind: input, shape index: {}]
  %s4 = inlined_call_operand.vmem [shape: bf16[4,128], index: 4, kind: input, shape index: {}]
  %s5 = inlined_call_operand.vmem [shape: f32[1,128], index: 5, kind: input, shape index: {}]
  %s6 = inlined_call_operand.vmem [shape: bf16[128,128], index: 6, kind: input, shape index: {}]
  %s7 = inlined_call_operand.vmem [shape: f32[1,128], index: 7, kind: input, shape index: {}]
  %s8 = inlined_call_operand.vmem [shape: bf16[128,4], index: 8, kind: input, shape index: {}]
  %s9 = inlined_call_operand.vmem [shape: f32[1,4], index: 9, kind: input, shape index: {}]
  %s10 = inlined_call_operand.hbm [shape: f32[2,4], index: 10, kind: output, shape index: {}]
  %s11 = sld [smem:[#allocation0]]
  $region50: #{tpu_custom_call.1} parent=0
    _
  %s13 = ssub.s32 1, %s11
  %s14 = scalar_select 0, %s13, %s11
  %15 = sst [smem:[#allocation2]] %s0
  $region1: #{tpu_custom_call.1} parent=0
    #allocation3 [shape = 'u8[1024]{0}', space=vmem, size = 0x400, scoped, tag = 'output window, operand 0, single buffered']
    #allocation4 [shape = 's32[1]{0}', space=sflag, size = 0x4, scoped, tag = 'scoped memory for tpu_custom_call.1']
    %16 = vsyncpa [#allocation4], 0
    // Predicated region
    $region2: #{tpu_custom_call.1} parent=1 // pred_check
      _
    $region3: #{tpu_custom_call.1} parent=1 // pred_check_branch
      %18 = sbr.rel (0) target = $region5
    $region4: #{tpu_custom_call.1} parent=1 // pred_region
      _
    $region5: #{tpu_custom_call.1} parent=1 // pred_fallthru
      _
    // Predicated region
    $region6: #{tpu_custom_call.1} parent=1 // pred_check
      _
    $region7: #{tpu_custom_call.1} parent=1 // pred_check_branch
      %20 = sbr.rel (0) target = $region9
    $region8: #{tpu_custom_call.1} parent=1 // pred_region
      _
    $region9: #{tpu_custom_call.1} parent=1 // pred_fallthru
      _
    // Predicated region
    $region10: #{tpu_custom_call.1} parent=1 // pred_check
      _
    $region11: #{tpu_custom_call.1} parent=1 // pred_check_branch
      %22 = sbr.rel (0) target = $region13
    $region12: #{tpu_custom_call.1} parent=1 // pred_region
      _
    $region13: #{tpu_custom_call.1} parent=1 // pred_fallthru
      _
    // Predicated region
    $region14: #{tpu_custom_call.1} parent=1 // pred_check
      _
    $region15: #{tpu_custom_call.1} parent=1 // pred_check_branch
      %24 = sbr.rel (0) target = $region17
    $region16: #{tpu_custom_call.1} parent=1 // pred_region
      _
    $region17: #{tpu_custom_call.1} parent=1 // pred_fallthru
      _
    // Predicated region
    $region18: #{tpu_custom_call.1} parent=1 // pred_check
      _
    $region19: #{tpu_custom_call.1} parent=1 // pred_check_branch
      %26 = sbr.rel (0) target = $region21
    $region20: #{tpu_custom_call.1} parent=1 // pred_region
      _
    $region21: #{tpu_custom_call.1} parent=1 // pred_fallthru
      _
    // Predicated region
    $region22: #{tpu_custom_call.1} parent=1 // pred_check
      _
    $region23: #{tpu_custom_call.1} parent=1 // pred_check_branch
      %28 = sbr.rel (0) target = $region25
    $region24: #{tpu_custom_call.1} parent=1 // pred_region
      _
    $region25: #{tpu_custom_call.1} parent=1 // pred_fallthru
      _
    // Predicated region
    $region26: #{tpu_custom_call.1} parent=1 // pred_check
      _
    $region27: #{tpu_custom_call.1} parent=1 // pred_check_branch
      %30 = sbr.rel (0) target = $region29
    $region28: #{tpu_custom_call.1} parent=1 // pred_region
      _
    $region29: #{tpu_custom_call.1} parent=1 // pred_fallthru
      _
    // Predicated region
    $region30: #{tpu_custom_call.1} parent=1 // pred_check
      _
    $region31: #{tpu_custom_call.1} parent=1 // pred_check_branch
      %32 = sbr.rel (0) target = $region33
    $region32: #{tpu_custom_call.1} parent=1 // pred_region
      _
    $region33: #{tpu_custom_call.1} parent=1 // pred_fallthru
      _
    // Predicated region
    $region34: #{tpu_custom_call.1} parent=1 // pred_check
      _
    $region35: #{tpu_custom_call.1} parent=1 // pred_check_branch
      %34 = sbr.rel (0) target = $region37
    $region36: #{tpu_custom_call.1} parent=1 // pred_region
      _
    $region37: #{tpu_custom_call.1} parent=1 // pred_fallthru
      _
    // Predicated region
    $region38: #{tpu_custom_call.1} parent=1 // pred_check
      _
    $region39: #{tpu_custom_call.1} parent=1 // pred_check_branch
      %36 = sbr.rel (0) target = $region41
    $region40: #{tpu_custom_call.1} parent=1 // pred_region
      _
    $region41: #{tpu_custom_call.1} parent=1 // pred_fallthru
      _
    %s38 = sld [smem:[#allocation2]]
    %v39 = vld [vmem:[%s2] sm:$0x3]
    %v40 = vld [vmem:[%s1] sm:$0x3]
    %v41 = vpack.c.bf16 %v40, %v40
    %v42 = vld [vmem:[%s3] sm:$0xf]
    %v43 = vld [vmem:[%s3 + $0x4] sm:$0xf]
    %v44 = vpack.c.bf16 %v39, %v39
    %v45 = vld [vmem:[%s4] sm:$0x3]
    %vm46 = vcmask 31744
    %v48 = vsel %vm46, %v44, 0
    %vm50 = vcmask 1041408
    %v52 = vsel %vm50, %v45, 0
    %54 = vmatprep.subr.bf16.mxu0 0
    %55 = vmatpush1.bf16.msra.mxu0 %v52
    %56 = vmatprep.subr.bf16.mxu0 0
    %57 = vmatpush1.bf16.msra.mxu0 0
    %58 = vmatprep.subr.bf16.mxu0 0
    %59 = vmatpush1.bf16.msra.mxu0 0
    %60 = vmatprep.subr.bf16.mxu0 0
    %61 = vmatpush1.bf16.msra.mxu0 0
    %62 = vmatprep.subr.bf16.mxu0 0
    %63 = vmatpush1.bf16.msra.mxu0 0
    %64 = vmatprep.subr.bf16.mxu0 0
    %65 = vmatpush1.bf16.msra.mxu0 0
    %66 = vmatprep.subr.bf16.mxu0 0
    %67 = vmatpush1.bf16.msra.mxu0 0
    %68 = vmatprep.subr.bf16.mxu0 0
    %69 = vmatpush1.bf16.msra.mxu0 0
    %70 = vmatprep.subr.bf16.mxu0 0
    %71 = vmatpush1.bf16.msra.mxu0 0
    %72 = vmatprep.subr.bf16.mxu0 0
    %73 = vmatpush1.bf16.msra.mxu0 0
    %74 = vmatprep.subr.bf16.mxu0 0
    %75 = vmatpush1.bf16.msra.mxu0 0
    %76 = vmatprep.subr.bf16.mxu0 0
    %77 = vmatpush1.bf16.msra.mxu0 0
    %78 = vmatprep.subr.bf16.mxu0 0
    %79 = vmatpush1.bf16.msra.mxu0 0
    %80 = vmatprep.subr.bf16.mxu0 0
    %81 = vmatpush1.bf16.msra.mxu0 0
    %82 = vmatprep.subr.bf16.mxu0 0
    %83 = vmatpush1.bf16.msra.mxu0 0
    %84 = vmatprep.subr.bf16.mxu0 0
    %85 = vmatpush1.bf16.msra.mxu0 0
    %86 = vmatprep.mubr.bf16.mxu0 0
    %87 = vmatmul.mubr.bf16.gmra.mrb[0].mxu0 %v48
    %v88 = vpop.f32.mrb[0].mxu0
    %v89 = vadd.f32 0.0, %v88
    %v90 = vpop.f32.mrb[0].mxu0
    %v91 = vpop.f32.mrb[0].mxu0
    %v92 = vpop.f32.mrb[0].mxu0
    %93 = vdwg.mxu0
    %v96 = vunpack.c.l.b16 %v42
    %v97 = vunpack.c.l.b16 %v43
    %v98 = vpack.c.b16 %v97, %v96
    %vm100 = vcmask 130048
    %v102 = vsel %vm100, %v41, 0
    %104 = vmatprep.subr.bf16.mxu0 0
    %105 = vmatpush1.bf16.msra.mxu0 %v98
    %106 = vmatprep.subr.bf16.mxu0 0
    %107 = vmatpush1.bf16.msra.mxu0 0
    %108 = vmatprep.subr.bf16.mxu0 0
    %109 = vmatpush1.bf16.msra.mxu0 0
    %110 = vmatprep.subr.bf16.mxu0 0
    %111 = vmatpush1.bf16.msra.mxu0 0
    %112 = vmatprep.subr.bf16.mxu0 0
    %113 = vmatpush1.bf16.msra.mxu0 0
    %114 = vmatprep.subr.bf16.mxu0 0
    %115 = vmatpush1.bf16.msra.mxu0 0
    %116 = vmatprep.subr.bf16.mxu0 0
    %117 = vmatpush1.bf16.msra.mxu0 0
    %118 = vmatprep.subr.bf16.mxu0 0
    %119 = vmatpush1.bf16.msra.mxu0 0
    %120 = vmatprep.subr.bf16.mxu0 0
    %121 = vmatpush1.bf16.msra.mxu0 0
    %122 = vmatprep.subr.bf16.mxu0 0
    %123 = vmatpush1.bf16.msra.mxu0 0
    %124 = vmatprep.subr.bf16.mxu0 0
    %125 = vmatpush1.bf16.msra.mxu0 0
    %126 = vmatprep.subr.bf16.mxu0 0
    %127 = vmatpush1.bf16.msra.mxu0 0
    %128 = vmatprep.subr.bf16.mxu0 0
    %129 = vmatpush1.bf16.msra.mxu0 0
    %130 = vmatprep.subr.bf16.mxu0 0
    %131 = vmatpush1.bf16.msra.mxu0 0
    %132 = vmatprep.subr.bf16.mxu0 0
    %133 = vmatpush1.bf16.msra.mxu0 0
    %134 = vmatprep.subr.bf16.mxu0 0
    %135 = vmatpush1.bf16.msra.mxu0 0
    %136 = vmatprep.mubr.bf16.mxu0 0
    %137 = vmatmul.mubr.bf16.gmra.mrb[0].mxu0 %v102
    %v138 = vpop.f32.mrb[0].mxu0
    %v139 = vadd.f32 %v89, %v138
    %v140 = vpop.f32.mrb[0].mxu0
    %v141 = vpop.f32.mrb[0].mxu0
    %v142 = vpop.f32.mrb[0].mxu0
    %143 = vdwg.mxu0
    %v144 = vld [vmem:[%s5] sm:$0x1]
    %v146 = vlaneseq
    %v147 = vshrl.u32 %v146, 7
    %v148 = vsub.s32 0, %v147
    %v149 = vrot.slane %v144, %v148
    %v151 = vadd.f32 %v139, %v149
    %v152 = vmax.f32 %v151, 0.0
    %v153 = vpack.c.bf16 %v152, %v152
    %v154 = vld [vmem:[%s6] sm:$0xf]
    %v155 = vld [vmem:[%s6 + $0x4] sm:$0xf]
    %v156 = vld [vmem:[%s6 + $0x8] sm:$0xf]
    %v157 = vld [vmem:[%s6 + $0xc] sm:$0xf]
    %v158 = vld [vmem:[%s6 + $0x10] sm:$0xf]
    %v159 = vld [vmem:[%s6 + $0x14] sm:$0xf]
    %v160 = vld [vmem:[%s6 + $0x18] sm:$0xf]
    %v161 = vld [vmem:[%s6 + $0x1c] sm:$0xf]
    %v162 = vld [vmem:[%s6 + $0x20] sm:$0xf]
    %v163 = vld [vmem:[%s6 + $0x24] sm:$0xf]
    %v164 = vld [vmem:[%s6 + $0x28] sm:$0xf]
    %v165 = vld [vmem:[%s6 + $0x2c] sm:$0xf]
    %v166 = vld [vmem:[%s6 + $0x30] sm:$0xf]
    %v167 = vld [vmem:[%s6 + $0x34] sm:$0xf]
    %v168 = vld [vmem:[%s6 + $0x38] sm:$0xf]
    %v169 = vld [vmem:[%s6 + $0x3c] sm:$0xf]
    %v170 = vld [vmem:[%s7] sm:$0x1]
    %v172 = vlaneseq
    %v173 = vshrl.u32 %v172, 7
    %v174 = vsub.s32 0, %v173
    %v175 = vrot.slane %v170, %v174
    %v193 = vunpack.c.l.b16 %v154
    %v194 = vunpack.c.l.b16 %v155
    %v195 = vunpack.c.l.b16 %v156
    %v196 = vunpack.c.l.b16 %v157
    %v197 = vunpack.c.l.b16 %v158
    %v198 = vunpack.c.l.b16 %v159
    %v199 = vunpack.c.l.b16 %v160
    %v200 = vunpack.c.l.b16 %v161
    %v201 = vunpack.c.l.b16 %v162
    %v202 = vunpack.c.l.b16 %v163
    %v203 = vunpack.c.l.b16 %v164
    %v204 = vunpack.c.l.b16 %v165
    %v205 = vunpack.c.l.b16 %v166
    %v206 = vunpack.c.l.b16 %v167
    %v207 = vunpack.c.l.b16 %v168
    %v208 = vunpack.c.l.b16 %v169
    %v209 = vpack.c.b16 %v194, %v193
    %v210 = vpack.c.b16 %v196, %v195
    %v211 = vpack.c.b16 %v198, %v197
    %v212 = vpack.c.b16 %v200, %v199
    %v213 = vpack.c.b16 %v202, %v201
    %v214 = vpack.c.b16 %v204, %v203
    %v215 = vpack.c.b16 %v206, %v205
    %v216 = vpack.c.b16 %v208, %v207
    %225 = vmatprep.subr.bf16.mxu0 0
    %226 = vmatpush1.bf16.msra.mxu0 %v209
    %227 = vmatprep.subr.bf16.mxu0 0
    %228 = vmatpush1.bf16.msra.mxu0 %v210
    %229 = vmatprep.subr.bf16.mxu0 0
    %230 = vmatpush1.bf16.msra.mxu0 %v211
    %231 = vmatprep.subr.bf16.mxu0 0
    %232 = vmatpush1.bf16.msra.mxu0 %v212
    %233 = vmatprep.subr.bf16.mxu0 0
    %234 = vmatpush1.bf16.msra.mxu0 %v213
    %235 = vmatprep.subr.bf16.mxu0 0
    %236 = vmatpush1.bf16.msra.mxu0 %v214
    %237 = vmatprep.subr.bf16.mxu0 0
    %238 = vmatpush1.bf16.msra.mxu0 %v215
    %239 = vmatprep.subr.bf16.mxu0 0
    %240 = vmatpush1.bf16.msra.mxu0 %v216
    %241 = vmatprep.subr.bf16.mxu0 0
    %242 = vmatpush1.bf16.msra.mxu0 0
    %243 = vmatprep.subr.bf16.mxu0 0
    %244 = vmatpush1.bf16.msra.mxu0 0
    %245 = vmatprep.subr.bf16.mxu0 0
    %246 = vmatpush1.bf16.msra.mxu0 0
    %247 = vmatprep.subr.bf16.mxu0 0
    %248 = vmatpush1.bf16.msra.mxu0 0
    %249 = vmatprep.subr.bf16.mxu0 0
    %250 = vmatpush1.bf16.msra.mxu0 0
    %251 = vmatprep.subr.bf16.mxu0 0
    %252 = vmatpush1.bf16.msra.mxu0 0
    %253 = vmatprep.subr.bf16.mxu0 0
    %254 = vmatpush1.bf16.msra.mxu0 0
    %255 = vmatprep.subr.bf16.mxu0 0
    %256 = vmatpush1.bf16.msra.mxu0 0
    %257 = vmatprep.mubr.bf16.mxu0 0
    %258 = vmatmul.mubr.bf16.gmra.mrb[0].mxu0 %v153
    %v259 = vpop.f32.mrb[0].mxu0
    %v260 = vadd.f32 %v175, %v259
    %v261 = vpop.f32.mrb[0].mxu0
    %v262 = vpop.f32.mrb[0].mxu0
    %v263 = vpop.f32.mrb[0].mxu0
    %264 = vdwg.mxu0
    %v265 = vmax.f32 %v260, 0.0
    %v266 = vpack.c.bf16 %v265, %v265
    %v267 = vld [vmem:[%s8] sm:$0xf]
    %v268 = vld [vmem:[%s8 + $0x4] sm:$0xf]
    %v269 = vld [vmem:[%s8 + $0x8] sm:$0xf]
    %v270 = vld [vmem:[%s8 + $0xc] sm:$0xf]
    %v271 = vld [vmem:[%s8 + $0x10] sm:$0xf]
    %v272 = vld [vmem:[%s8 + $0x14] sm:$0xf]
    %v273 = vld [vmem:[%s8 + $0x18] sm:$0xf]
    %v274 = vld [vmem:[%s8 + $0x1c] sm:$0xf]
    %v275 = vld [vmem:[%s8 + $0x20] sm:$0xf]
    %v276 = vld [vmem:[%s8 + $0x24] sm:$0xf]
    %v277 = vld [vmem:[%s8 + $0x28] sm:$0xf]
    %v278 = vld [vmem:[%s8 + $0x2c] sm:$0xf]
    %v279 = vld [vmem:[%s8 + $0x30] sm:$0xf]
    %v280 = vld [vmem:[%s8 + $0x34] sm:$0xf]
    %v281 = vld [vmem:[%s8 + $0x38] sm:$0xf]
    %v282 = vld [vmem:[%s8 + $0x3c] sm:$0xf]
    %v283 = vld [vmem:[%s9] sm:$0x1]
    %v285 = vlaneseq
    %v286 = vshrl.u32 %v285, 7
    %v287 = vsub.s32 0, %v286
    %v288 = vrot.slane %v283, %v287
    %v306 = vunpack.c.l.b16 %v267
    %v307 = vunpack.c.l.b16 %v268
    %v308 = vunpack.c.l.b16 %v269
    %v309 = vunpack.c.l.b16 %v270
    %v310 = vunpack.c.l.b16 %v271
    %v311 = vunpack.c.l.b16 %v272
    %v312 = vunpack.c.l.b16 %v273
    %v313 = vunpack.c.l.b16 %v274
    %v314 = vunpack.c.l.b16 %v275
    %v315 = vunpack.c.l.b16 %v276
    %v316 = vunpack.c.l.b16 %v277
    %v317 = vunpack.c.l.b16 %v278
    %v318 = vunpack.c.l.b16 %v279
    %v319 = vunpack.c.l.b16 %v280
    %v320 = vunpack.c.l.b16 %v281
    %v321 = vunpack.c.l.b16 %v282
    %v322 = vpack.c.b16 %v307, %v306
    %v323 = vpack.c.b16 %v309, %v308
    %v324 = vpack.c.b16 %v311, %v310
    %v325 = vpack.c.b16 %v313, %v312
    %v326 = vpack.c.b16 %v315, %v314
    %v327 = vpack.c.b16 %v317, %v316
    %v328 = vpack.c.b16 %v319, %v318
    %v329 = vpack.c.b16 %v321, %v320
    %338 = vmatprep.subr.bf16.mxu0 0
    %339 = vmatpush1.bf16.msra.mxu0 %v322
    %340 = vmatprep.subr.bf16.mxu0 0
    %341 = vmatpush1.bf16.msra.mxu0 %v323
    %342 = vmatprep.subr.bf16.mxu0 0
    %343 = vmatpush1.bf16.msra.mxu0 %v324
    %344 = vmatprep.subr.bf16.mxu0 0
    %345 = vmatpush1.bf16.msra.mxu0 %v325
    %346 = vmatprep.subr.bf16.mxu0 0
    %347 = vmatpush1.bf16.msra.mxu0 %v326
    %348 = vmatprep.subr.bf16.mxu0 0
    %349 = vmatpush1.bf16.msra.mxu0 %v327
    %350 = vmatprep.subr.bf16.mxu0 0
    %351 = vmatpush1.bf16.msra.mxu0 %v328
    %352 = vmatprep.subr.bf16.mxu0 0
    %353 = vmatpush1.bf16.msra.mxu0 %v329
    %354 = vmatprep.subr.bf16.mxu0 0
    %355 = vmatpush1.bf16.msra.mxu0 0
    %356 = vmatprep.subr.bf16.mxu0 0
    %357 = vmatpush1.bf16.msra.mxu0 0
    %358 = vmatprep.subr.bf16.mxu0 0
    %359 = vmatpush1.bf16.msra.mxu0 0
    %360 = vmatprep.subr.bf16.mxu0 0
    %361 = vmatpush1.bf16.msra.mxu0 0
    %362 = vmatprep.subr.bf16.mxu0 0
    %363 = vmatpush1.bf16.msra.mxu0 0
    %364 = vmatprep.subr.bf16.mxu0 0
    %365 = vmatpush1.bf16.msra.mxu0 0
    %366 = vmatprep.subr.bf16.mxu0 0
    %367 = vmatpush1.bf16.msra.mxu0 0
    %368 = vmatprep.subr.bf16.mxu0 0
    %369 = vmatpush1.bf16.msra.mxu0 0
    %370 = vmatprep.mubr.bf16.mxu0 0
    %371 = vmatmul.mubr.bf16.gmra.mrb[0].mxu0 %v266
    %v372 = vpop.f32.mrb[0].mxu0
    %v373 = vadd.f32 %v288, %v372
    %v374 = vpop.f32.mrb[0].mxu0
    %v375 = vpop.f32.mrb[0].mxu0
    %v376 = vpop.f32.mrb[0].mxu0
    %377 = vdwg.mxu0
    %v378 = vtanh.pop %v373
    %v379 = vstv %s38
    %v380 = vmul.f32 %v379, %v378
    %v381 = vadd.f32 %v39, %v380
    %v382 = vmax.f32 %v381, -1.0
    %v383 = vmin.f32 %v382, 1.0
    %vm384 = vcmask 25600
    %385 = vst.msk [vmem:[#allocation3] sm:$0x3] %vm384, %v383
    // Predicated region
    $region42: #{tpu_custom_call.1} parent=1 // pred_check
      _
    $region43: #{tpu_custom_call.1} parent=1 // pred_check_branch
      %387 = sbr.rel (0) target = $region45
    $region44: #{tpu_custom_call.1} parent=1 // pred_region
      %s389 = ssub.s32 32, 32
      %390 = vsyncadd [#allocation4], %s389
      %s392 = sshll.u32 [#allocation3], 4
      %s393 = int_to_ptr.vmem [resolvable:$true] %s392
      %395 = dma.vmem_to_hbm [thread:$0]  %s393, 32, %s10, [#allocation4]
    $region45: #{tpu_custom_call.1} parent=1 // pred_fallthru
      _
    // Predicated region
    $region46: #{tpu_custom_call.1} parent=1 // pred_check
      _
    $region47: #{tpu_custom_call.1} parent=1 // pred_check_branch
      %397 = sbr.rel (0) target = $region49
    $region48: #{tpu_custom_call.1} parent=1 // pred_region
      %398 = dma.done [#allocation4], 32
    $region49: #{tpu_custom_call.1} parent=1 // pred_fallthru
      _
    %399 = vsyncpa [#allocation4], 1

</llo_original>
